<compile_context>
chip_gen: v7x
topology: tpu7x:2x2x1
jax: 0.10.0
libtpu: 0.0.40
codegen_flags: <defaults>
</compile_context>

<pallas_src>
import jax
import jax.numpy as jnp
from jax.experimental import pallas as pl
from jax.experimental.pallas import tpu as pltpu


def _patch_embed_kernel(p_ref, w_ref, b_ref, o_ref):
    # p_ref: (tm, K), w_ref: (K, E_pad), b_ref: (1, E_pad) f32, o_ref: (tm, E_pad)
    acc = jnp.dot(p_ref[...], w_ref[...], preferred_element_type=jnp.float32)
    # Bias add stays in the f32 accumulator (v5e-safe: no bf16 VPU needed).
    o_ref[...] = (acc + b_ref[...]).astype(o_ref.dtype)


def _round_up(x, m):
    return ((x + m - 1) // m) * m


def _vmem_budget_bytes():
    """~80% of this core's physical VMEM (compiler needs headroom for scratch)."""
    try:
        cap = int(pltpu.get_tpu_info().vmem_capacity_bytes)
    except Exception:
        cap = 64 * 1024 * 1024  # v7x per-TensorCore VMEM -- the smallest case
    return int(cap * 0.8)


def prepare_patch_embed_weight(weight, compute_dtype=None):
    """Hoistable init-time relayout: (E, C, ph, pw) conv weight -> (K, E)."""
    E = weight.shape[0]
    w = weight.reshape(E, -1).T
    if compute_dtype is not None:
        w = w.astype(compute_dtype)
    return w


def patch_embed_pallas(x, weight, bias, patch_size, *, tm=1024,
                       compute_dtype=None, out_dtype=None):
    """PatchEmbed forward.

    x:      (B, C, H, W)
    weight: (E, C, ph, pw) PyTorch Conv2d layout, OR pre-laid-out (K, E) matrix
            from prepare_patch_embed_weight().
    bias:   (E,) or None.
    Returns (B, num_patches, E) in out_dtype (default x.dtype).
    """
    B, C, H, W = x.shape
    ph, pw = patch_size
    assert H % ph == 0 and W % pw == 0
    gh, gw = H // ph, W // pw
    num_patches = gh * gw
    K = C * ph * pw

    cdtype = jnp.dtype(compute_dtype) if compute_dtype is not None else jnp.dtype(x.dtype)
    odtype = jnp.dtype(out_dtype) if out_dtype is not None else jnp.dtype(x.dtype)

    # --- weight / bias layout (hoist via prepare_patch_embed_weight when possible) ---
    if weight.ndim == 4:
        E = weight.shape[0]
        w_mat = prepare_patch_embed_weight(weight)
    else:
        assert weight.ndim == 2 and weight.shape[0] == K, weight.shape
        E = weight.shape[1]
        w_mat = weight
    w_mat = w_mat.astype(cdtype)
    if bias is None:
        b_mat = jnp.zeros((1, E), jnp.float32)
    else:
        b_mat = bias.reshape(1, E).astype(jnp.float32)

    # Pad E to a lane-dense multiple of 128 so output stores are unmasked vst.
    # (No-op for typical E = 768 / 1024.)
    E_pad = max(128, _round_up(E, 128))
    if E_pad != E:
        w_mat = jnp.pad(w_mat, ((0, 0), (0, E_pad - E)))
        b_mat = jnp.pad(b_mat, ((0, 0), (0, E_pad - E)))

    # --- patch extraction (im2col) ---
    # Cast to the compute dtype FIRST so any materialized intermediate moves
    # cdtype-sized bytes. K is intentionally not padded (memory-bound kernel).
    # (B, C, gh, ph, gw, pw) -> (B, gh, gw, C, ph, pw) -> (B*gh*gw, C*ph*pw)
    xp = x.astype(cdtype).reshape(B, C, gh, ph, gw, pw)
    xp = jnp.transpose(xp, (0, 2, 4, 1, 3, 5))
    patches = xp.reshape(B * num_patches, K)
    M = B * num_patches

    # --- tile selection -------------------------------------------------------
    in_bytes = jnp.dtype(cdtype).itemsize
    out_bytes = jnp.dtype(odtype).itemsize
    sub = 16 if in_bytes == 2 else 8

    def _footprint(t):
        # Double-buffered LHS / output tiles; the weight & bias blocks are
        # grid-invariant ((0,0) index map) so they are DMA'd only once, but the
        # pipeline still reserves two buffers for them -> count 2x (honest).
        return (2 * t * K * in_bytes + 2 * t * E_pad * out_bytes
                + 2 * K * E_pad * in_bytes + 2 * E_pad * 4)

    budget = _vmem_budget_bytes()
    tm_eff = max(sub, (min(tm, _round_up(M, sub)) // sub) * sub)
    while tm_eff > sub and _footprint(tm_eff) > budget:
        tm_eff = max(sub, ((tm_eff // 2) // sub) * sub)
    # Guarantee >= 2 grid steps when M allows it so both v7x TensorCores get work.
    if M > sub and _round_up(M, tm_eff) // tm_eff < 2:
        tm_eff = max(sub, _round_up((M + 1) // 2, sub))
    M_pad = _round_up(M, tm_eff)
    if M_pad != M:
        # Padded rows produce bias-only garbage that is sliced off afterwards.
        patches = jnp.pad(patches, ((0, M_pad - M), (0, 0)))

    est = _footprint(tm_eff)
    vmem_limit = int(min(budget, max(32 * 1024 * 1024, 2 * est)))
    vmem_limit = int(max(vmem_limit, est + 4 * 1024 * 1024))

    out = pl.pallas_call(
        _patch_embed_kernel,
        out_shape=jax.ShapeDtypeStruct((M_pad, E_pad), odtype),
        grid_spec=pltpu.PrefetchScalarGridSpec(
            num_scalar_prefetch=0,
            grid=(M_pad // tm_eff,),
            in_specs=[
                pl.BlockSpec((tm_eff, K), lambda i: (i, 0)),
                # Grid-invariant blocks: the pipeline does not re-DMA them
                # across grid steps (same block index every step).
                pl.BlockSpec((K, E_pad), lambda i: (0, 0)),
                pl.BlockSpec((1, E_pad), lambda i: (0, 0)),
            ],
            out_specs=pl.BlockSpec((tm_eff, E_pad), lambda i: (i, 0)),
        ),
        compiler_params=pltpu.CompilerParams(
            dimension_semantics=("parallel",),
            vmem_limit_bytes=vmem_limit,
            # Let XLA fuse the pad/convert producer of `patches` into the pallas
            # input where it can (the 6-D transpose itself typically still
            # materializes -- see TODO at the top of the file).
            allow_input_fusion=[True, False, False],
        ),
    )(patches, w_mat, b_mat)

    out = out[:M, :E]
    # (B*num_patches, E) -> (B, num_patches, E)  (== flatten(2).transpose(1,2))
    return out.reshape(B, num_patches, E)

    # TODO(synk): norm_layer is Identity in this config; a LayerNorm variant
    # would need an additional fused reduction in-kernel.


def patch_embed_ref(x, weight, bias, patch_size, precision=None):
    """Pure-JAX reference: conv2d with kernel=stride=patch, then NLC flatten."""
    ph, pw = patch_size
    y = jax.lax.conv_general_dilated(
        x, weight, window_strides=(ph, pw), padding="VALID",
        dimension_numbers=("NCHW", "OIHW", "NCHW"), precision=precision)
    if bias is not None:
        y = y + bias.reshape(1, -1, 1, 1)
    B, E, gh, gw = y.shape
    return jnp.transpose(y.reshape(B, E, gh * gw), (0, 2, 1))


if __name__ == "__main__":
    key = jax.random.PRNGKey(0)

    # --- Test 1: small config (img=16, patch=4, C=4, E=32), f32 ---
    # E=32 exercises the lane-dense E padding (32 -> 128, sliced afterwards).
    B, C, H, W = 2, 4, 16, 16
    ph, pw = 4, 4
    E = 32
    kx, kw, kb = jax.random.split(key, 3)
    x = jax.random.normal(kx, (B, C, H, W), dtype=jnp.float32)
    weight = jax.random.normal(kw, (E, C, ph, pw), dtype=jnp.float32) * 0.02
    bias = jax.random.normal(kb, (E,), dtype=jnp.float32) * 0.02

    out = jax.block_until_ready(patch_embed_pallas(x, weight, bias, (ph, pw)))
    ref = patch_embed_ref(x, weight, bias, (ph, pw))
    assert out.shape == (B, (H // ph) * (W // pw), E), out.shape
    assert jnp.allclose(out, ref, atol=1e-4, rtol=1e-4), float(
        jnp.max(jnp.abs(out - ref)))

    # Pre-laid-out (K, E) weight path (init-time hoist of the relayout).
    w_pre = prepare_patch_embed_weight(weight)
    out_pre = jax.block_until_ready(patch_embed_pallas(x, w_pre, bias, (ph, pw)))
    assert jnp.allclose(out_pre, out, atol=1e-6, rtol=1e-6)

    # bf16 MXU compute path (valid on v5e/v6e/v7x alike), looser tolerance.
    out_bf = jax.block_until_ready(
        patch_embed_pallas(x, weight, bias, (ph, pw), compute_dtype=jnp.bfloat16))
    assert jnp.allclose(out_bf, ref, atol=5e-2, rtol=5e-2), float(
        jnp.max(jnp.abs(out_bf - ref)))

    # bf16 output stream (downstream bf16 transformer): halves output bytes.
    out_bf16o = jax.block_until_ready(
        patch_embed_pallas(x, weight, bias, (ph, pw),
                           compute_dtype=jnp.bfloat16, out_dtype=jnp.bfloat16))
    assert out_bf16o.dtype == jnp.bfloat16
    assert jnp.allclose(out_bf16o.astype(jnp.float32), ref, atol=5e-2, rtol=5e-2)

    # --- Test 2: ragged M (exercises padding + the >=2-grid-step split) ---
    B2, C2, H2, W2 = 2, 3, 48, 48
    ph2, pw2, E2 = 16, 16, 128           # M = 2 * 3 * 3 = 18 -> 2 tiles of 16
    kx2, kw2, kb2 = jax.random.split(jax.random.PRNGKey(1), 3)
    x2 = jax.random.normal(kx2, (B2, C2, H2, W2), dtype=jnp.float32)
    weight2 = jax.random.normal(kw2, (E2, C2, ph2, pw2), dtype=jnp.float32) * 0.02
    bias2 = jax.random.normal(kb2, (E2,), dtype=jnp.float32) * 0.02

    out2 = jax.block_until_ready(patch_embed_pallas(x2, weight2, bias2, (ph2, pw2)))
    ref2 = patch_embed_ref(x2, weight2, bias2, (ph2, pw2),
                           precision=jax.lax.Precision.HIGHEST)
    assert out2.shape == (B2, (H2 // ph2) * (W2 // pw2), E2), out2.shape
    assert jnp.allclose(out2, ref2, atol=2e-3, rtol=2e-3), float(
        jnp.max(jnp.abs(out2 - ref2)))

    print("KERNEL_OK")
</pallas_src>

<mosaic_0001>
module attributes {stable_mosaic.version = 11 : i64} {
  func.func @_patch_embed_kernel(%arg0: i32, %arg1: memref<16x64xf32, #tpu.memory_space<vmem>>, %arg2: memref<64x128xf32, #tpu.memory_space<vmem>>, %arg3: memref<1x128xf32, #tpu.memory_space<vmem>>, %arg4: memref<16x128xf32, #tpu.memory_space<vmem>>) attributes {dimension_semantics = [#tpu.dimension_semantics<parallel>], iteration_bounds = array<i64: 2>, scalar_prefetch = 0 : i64, scratch_operands = 0 : i64, tpu.core_type = #tpu.core_type<tc>, window_params = [{transform_indices = @transform_0, window_bounds = array<i64: 16, 64>}, {pipeline_mode = #tpu.pipeline_mode<synchronous>, transform_indices = @transform_1, window_bounds = array<i64: 64, 128>}, {pipeline_mode = #tpu.pipeline_mode<synchronous>, transform_indices = @transform_2, window_bounds = array<i64: 1, 128>}, {transform_indices = @transform_3, window_bounds = array<i64: 16, 128>}]} {
    %c0 = arith.constant 0 : index
    %c0_0 = arith.constant 0 : index
    %0 = vector.load %arg1[%c0, %c0_0] : memref<16x64xf32, #tpu.memory_space<vmem>>, vector<16x64xf32>
    %c0_1 = arith.constant 0 : index
    %c0_2 = arith.constant 0 : index
    %1 = vector.load %arg2[%c0_1, %c0_2] : memref<64x128xf32, #tpu.memory_space<vmem>>, vector<64x128xf32>
    %cst = arith.constant dense<0.000000e+00> : vector<16x128xf32>
    %2 = tpu.matmul %0, %1, %cst {dimension_numbers = #tpu.dot_dimension_numbers<[1], [0], [0], [1], [0, 0, 1, 1], [], []>} : vector<16x64xf32>, vector<64x128xf32>, vector<16x128xf32> -> vector<16x128xf32>
    %c0_3 = arith.constant 0 : index
    %c0_4 = arith.constant 0 : index
    %3 = vector.load %arg3[%c0_3, %c0_4] : memref<1x128xf32, #tpu.memory_space<vmem>>, vector<1x128xf32>
    %4 = vector.broadcast %3 : vector<1x128xf32> to vector<16x128xf32>
    %5 = arith.addf %2, %4 : vector<16x128xf32>
    %c0_5 = arith.constant 0 : index
    %c0_6 = arith.constant 0 : index
    %6 = vector.load %arg4[%c0_5, %c0_6] : memref<16x128xf32, #tpu.memory_space<vmem>>, vector<16x128xf32>
    tpu.vector_store %arg4[%c0_5, %c0_6], %5 {strides = array<i32>} : memref<16x128xf32, #tpu.memory_space<vmem>>, vector<16x128xf32>,
    return
  }
  func.func @transform_0(%arg0: i32) -> (i32, i32) {
    %c0_i32 = arith.constant 0 : i32
    %c0_i32_0 = arith.constant 0 : i32
    return %arg0, %c0_i32 : i32, i32
  }
  func.func @transform_1(%arg0: i32) -> (i32, i32) {
    %c0_i32 = arith.constant 0 : i32
    %c0_i32_0 = arith.constant 0 : i32
    %c0_i32_1 = arith.constant 0 : i32
    return %c0_i32, %c0_i32_0 : i32, i32
  }
  func.func @transform_2(%arg0: i32) -> (i32, i32) {
    %c0_i32 = arith.constant 0 : i32
    %c0_i32_0 = arith.constant 0 : i32
    %c0_i32_1 = arith.constant 0 : i32
    return %c0_i32, %c0_i32_0 : i32, i32
  }
  func.func @transform_3(%arg0: i32) -> (i32, i32) {
    %c0_i32 = arith.constant 0 : i32
    %c0_i32_0 = arith.constant 0 : i32
    return %arg0, %c0_i32 : i32, i32
  }
}

</mosaic_0001>

<llo_original>
// kernel: tpu_custom_call.1
$region0: #{tpu_custom_call.1}
  #allocation0 [shape = 'u32[]', space=smem, size = 0x4, offset = 0x4, fixed_abs, tag = 'smem constant byte address 0x4 - core index']
  #allocation1 [shape = 'u32[144,128]{1,0:T(1,128)}', space=vmem, size = 0x12000, scoped, tag = 'internal scratch']
  %s0 = inlined_call_operand.hbm [shape: f32[32,64], index: 0, kind: input, shape index: {}]
  %s1 = inlined_call_operand.hbm [shape: f32[64,128], index: 1, kind: input, shape index: {}]
  %s2 = inlined_call_operand.vmem [shape: f32[1,128], index: 2, kind: input, shape index: {}]
  %s3 = inlined_call_operand.hbm [shape: f32[32,128], index: 3, kind: output, shape index: {}]
  %s4 = sld [smem:[#allocation0]]
  $region53: #{tpu_custom_call.1} parent=0
    _
  %s6 = ssub.s32 1, %s4
  %s7 = scalar_select 0, %s6, %s4
  $region1: #{tpu_custom_call.1} parent=0
    #allocation2 [shape = 'u8[16384]{0}', space=vmem, size = 0x4000, scoped, tag = 'input window, operand 0']
    #allocation3 [shape = 's32[2]{0}', space=sflag, size = 0x8, scoped, tag = 'scoped memory for tpu_custom_call.1']
    #allocation4 [shape = 's32[2]{0}', space=sflag, size = 0x8, scoped, tag = 'scoped memory for tpu_custom_call.1']
    #allocation5 [shape = 'u8[32768]{0}', space=vmem, size = 0x8000, scoped, tag = 'input window, operand 1, single buffered']
    #allocation6 [shape = 's32[1]{0}', space=sflag, size = 0x4, scoped, tag = 'scoped memory for tpu_custom_call.1']
    #allocation7 [shape = 'u8[16384]{0}', space=vmem, size = 0x4000, scoped, tag = 'output window, operand 0']
    %8 = vsyncpa [#allocation3], 0
    %s9 = scalar_lea.sflag [#allocation3], 1
    %10 = vsyncpa %s9, 0
    %11 = vsyncpa [#allocation6], 0
    %12 = vsyncpa [#allocation4], 0
    %s13 = scalar_lea.sflag [#allocation4], 1
    %14 = vsyncpa %s13, 0
    loop: start=0, step=1, limit=4
    $region2: #{tpu_custom_call.1} parent=1 // loop_pre_header
      _
    $region3: #{tpu_custom_call.1} parent=1 // loop_header
      %s16 = sphi 0, %s20
      %p17 = scmp.ge.s32.totalorder %s16, 4
      %s26 = sphi 0, %s28
      %s29 = sphi 0, %s26
      %s30 = sphi 0, %s29
      %s46 = sphi 0, %s30
      %s50 = sphi 0, %s50
      %s52 = sphi 0, %s50
      %s53 = sphi 0, %s52
      %s67 = sphi 0, %s53
      %s71 = sphi 0, %s71
      %s73 = sphi 0, %s71
      %s74 = sphi 0, %s73
      %s88 = sphi 0, %s74
      %s94 = sphi 0, %s96
      %s97 = sphi 0, %s94
      %s98 = sphi 0, %s97
      %s114 = sphi 0, %s98
    $region4: #{tpu_custom_call.1} parent=1 // loop_header_branch
      %19 = sbr.rel (%p17) target = $region8
    $region5: #{tpu_custom_call.1} parent=1 // loop_body
      %s21 = ssub.s32 %s16, 1
      %s22 = ssub.s32 %s16, 2
      %s23 = sadd.s32 %s16, 1
      %s24 = ssub.s32 %s16, %s23
      %p25 = scmp.eq.s32.totalorder %s24, 0
      %s27 = sadd.s32 %s26, 1
      %s28 = scalar_select %p25, %s26, %s27
      %p31 = pneg %p25
      %p32 = scmp.eq.s32.totalorder %s16, 1
      %p33 = por %p31, %p32
      %p34 = scmp.ne.s32.totalorder %s26, %s29
      %p35 = scmp.eq.s32.totalorder %s16, 0
      %p36 = por %p34, %p35
      %p37 = scmp.ne.s32.totalorder %s26, %s29
      %p38 = scmp.eq.s32.totalorder %s21, 1
      %p39 = por %p37, %p38
      %p40 = scmp.ne.s32.totalorder %s29, %s30
      %p41 = scmp.eq.s32.totalorder %s21, 0
      %p42 = por %p40, %p41
      %p43 = scmp.ne.s32.totalorder %s29, %s30
      %p44 = scmp.eq.s32.totalorder %s22, 1
      %p45 = por %p43, %p44
      %p47 = scmp.ne.s32.totalorder %s30, %s46
      %p48 = scmp.eq.s32.totalorder %s22, 0
      %p49 = por %p47, %p48
      %s51 = sadd.s32 %s50, 1
      %p54 = scmp.eq.s32.totalorder %s16, 1
      %p55 = scmp.ne.s32.totalorder %s50, %s52
      %p56 = scmp.eq.s32.totalorder %s16, 0
      %p57 = por %p55, %p56
      %p58 = scmp.ne.s32.totalorder %s50, %s52
      %p59 = scmp.eq.s32.totalorder %s21, 1
      %p60 = por %p58, %p59
      %p61 = scmp.ne.s32.totalorder %s52, %s53
      %p62 = scmp.eq.s32.totalorder %s21, 0
      %p63 = por %p61, %p62
      %p64 = scmp.ne.s32.totalorder %s52, %s53
      %p65 = scmp.eq.s32.totalorder %s22, 1
      %p66 = por %p64, %p65
      %p68 = scmp.ne.s32.totalorder %s53, %s67
      %p69 = scmp.eq.s32.totalorder %s22, 0
      %p70 = por %p68, %p69
      %s72 = sadd.s32 %s71, 1
      %p75 = scmp.eq.s32.totalorder %s16, 1
      %p76 = scmp.ne.s32.totalorder %s71, %s73
      %p77 = scmp.eq.s32.totalorder %s16, 0
      %p78 = por %p76, %p77
      %p79 = scmp.ne.s32.totalorder %s71, %s73
      %p80 = scmp.eq.s32.totalorder %s21, 1
      %p81 = por %p79, %p80
      %p82 = scmp.ne.s32.totalorder %s73, %s74
      %p83 = scmp.eq.s32.totalorder %s21, 0
      %p84 = por %p82, %p83
      %p85 = scmp.ne.s32.totalorder %s73, %s74
      %p86 = scmp.eq.s32.totalorder %s22, 1
      %p87 = por %p85, %p86
      %p89 = scmp.ne.s32.totalorder %s74, %s88
      %p90 = scmp.eq.s32.totalorder %s22, 0
      %p91 = por %p89, %p90
      %s92 = ssub.s32 %s16, %s23
      %p93 = scmp.eq.s32.totalorder %s92, 0
      %s95 = sadd.s32 %s94, 1
      %s96 = scalar_select %p93, %s94, %s95
      %p99 = pneg %p93
      %p100 = scmp.eq.s32.totalorder %s16, 1
      %p101 = por %p99, %p100
      %p102 = scmp.ne.s32.totalorder %s94, %s97
      %p103 = scmp.eq.s32.totalorder %s16, 0
      %p104 = por %p102, %p103
      %p105 = scmp.ne.s32.totalorder %s94, %s97
      %p106 = scmp.eq.s32.totalorder %s21, 1
      %p107 = por %p105, %p106
      %p108 = scmp.ne.s32.totalorder %s97, %s98
      %p109 = scmp.eq.s32.totalorder %s21, 0
      %p110 = por %p108, %p109
      %p111 = scmp.ne.s32.totalorder %s97, %s98
      %p112 = scmp.eq.s32.totalorder %s22, 1
      %p113 = por %p111, %p112
      %p115 = scmp.ne.s32.totalorder %s98, %s114
      %p116 = scmp.eq.s32.totalorder %s22, 0
      %p117 = por %p115, %p116
      %p118 = scmp.le.s32.totalorder 1, %s16
      %p119 = scmp.lt.s32.totalorder %s16, 3
      %p120 = pnand %p118, %p119
      %p121 = pneg %p120
      // Predicated region
      $region9: #{tpu_custom_call.1} parent=5 // pred_check
        _
      $region10: #{tpu_custom_call.1} parent=5 // pred_check_branch
        %123 = sbr.rel (%p120) target = $region12
      $region11: #{tpu_custom_call.1} parent=5 // pred_region
        %s124 = ssub.s32 %s16, 1
        // Predicated region
        $region13: #{tpu_custom_call.1} parent=11 // pred_check
          %p125 = pneg %p63
        $region14: #{tpu_custom_call.1} parent=11 // pred_check_branch
          %127 = sbr.rel (%p125) target = $region16
        $region15: #{tpu_custom_call.1} parent=11 // pred_region
          %s129 = ssub.s32 1024, 1024
          %130 = vsyncadd [#allocation6], %s129
          %s131 = sshll.u32 [#allocation5], 4
          %s132 = int_to_ptr.vmem [resolvable:$true] %s131
          %137 = dma.hbm_to_vmem [thread:$0]  %s1, 1024, %s132, [#allocation6], 128, 128, 8
        $region16: #{tpu_custom_call.1} parent=11 // pred_fallthru
          _
        // Predicated region
        $region17: #{tpu_custom_call.1} parent=11 // pred_check
          %p138 = pneg %p84
        $region18: #{tpu_custom_call.1} parent=11 // pred_check_branch
          %140 = sbr.rel (%p138) target = $region20
        $region19: #{tpu_custom_call.1} parent=11 // pred_region
          _
        $region20: #{tpu_custom_call.1} parent=11 // pred_fallthru
          _
      $region12: #{tpu_custom_call.1} parent=5 // pred_fallthru
        _
      %p141 = scmp.lt.s32.totalorder %s16, 2
      // Predicated region
      $region21: #{tpu_custom_call.1} parent=5 // pred_check
        %p142 = pneg %p141
      $region22: #{tpu_custom_call.1} parent=5 // pred_check_branch
        %144 = sbr.rel (%p142) target = $region24
      $region23: #{tpu_custom_call.1} parent=5 // pred_region
        // Predicated region
        $region25: #{tpu_custom_call.1} parent=23 // pred_check
          %p145 = pneg %p36
        $region26: #{tpu_custom_call.1} parent=23 // pred_check_branch
          %147 = sbr.rel (%p145) target = $region28
        $region27: #{tpu_custom_call.1} parent=23 // pred_region
          %s148 = sand.u32 %s26, 1
          %s149 = scalar_lea.sflag [#allocation3], %s148
          %s150 = sand.u32 %s26, 1
          %s151 = smul.addr %s150, 16
          %s152 = scalar_lea.vmem [#allocation2], %s151
          %s153 = smul.u32 2, %s16
          %s155 = ssub.s32 256, 256
          %156 = vsyncadd %s149, %s155
          %s157 = smul.addr %s153, 128
          %s158 = scalar_lea.hbm %s0, %s157
          %s159 = sshll.u32 %s152, 4
          %s160 = int_to_ptr.vmem [resolvable:$true] %s159
          %165 = dma.hbm_to_vmem [thread:$0]  %s158, 256, %s160, %s149, 128, 128, 8
        $region28: #{tpu_custom_call.1} parent=23 // pred_fallthru
          _
      $region24: #{tpu_custom_call.1} parent=5 // pred_fallthru
        _
      %p166 = scmp.le.s32.totalorder 1, %s16
      %p167 = scmp.lt.s32.totalorder %s16, 3
      %p168 = pnand %p166, %p167
      %p169 = pneg %p168
      // Predicated region
      $region29: #{tpu_custom_call.1} parent=5 // pred_check
        _
      $region30: #{tpu_custom_call.1} parent=5 // pred_check_branch
        %171 = sbr.rel (%p168) target = $region32
      $region31: #{tpu_custom_call.1} parent=5 // pred_region
        %s172 = ssub.s32 %s16, 1
        %s173 = sand.u32 %s29, 1
        %s174 = scalar_lea.sflag [#allocation3], %s173
        %s175 = sand.u32 %s29, 1
        %s176 = smul.addr %s175, 16
        %s177 = scalar_lea.vmem [#allocation2], %s176
        // Predicated region
        $region33: #{tpu_custom_call.1} parent=31 // pred_check
          %p178 = pneg %p42
        $region34: #{tpu_custom_call.1} parent=31 // pred_check_branch
          %180 = sbr.rel (%p178) target = $region36
        $region35: #{tpu_custom_call.1} parent=31 // pred_region
          %181 = dma.done %s174, 256
        $region36: #{tpu_custom_call.1} parent=31 // pred_fallthru
          _
        // Predicated region
        $region37: #{tpu_custom_call.1} parent=31 // pred_check
          %p182 = pneg %p63
        $region38: #{tpu_custom_call.1} parent=31 // pred_check_branch
          %184 = sbr.rel (%p182) target = $region40
        $region39: #{tpu_custom_call.1} parent=31 // pred_region
          %185 = dma.done [#allocation6], 1024
        $region40: #{tpu_custom_call.1} parent=31 // pred_fallthru
          _
        %s186 = sand.u32 %s29, 1
        %s187 = scalar_lea.sflag [#allocation3], %s186
        %s188 = sand.u32 %s29, 1
        %s189 = smul.addr %s188, 16
        %s190 = scalar_lea.vmem [#allocation2], %s189
        %p191 = pneg %p42
        %p192 = pneg %p39
        %p193 = pneg %p63
        %p194 = pneg %p60
        %p195 = pneg %p84
        %p196 = pneg %p81
        %p197 = pneg %p110
        %p198 = pneg %p107
        %s199 = sand.u32 %s97, 1
        %s200 = scalar_lea.sflag [#allocation4], %s199
        %s201 = sand.u32 %s97, 1
        %s202 = smul.addr %s201, 16
        %s203 = scalar_lea.vmem [#allocation7], %s202
        %s204 = smul.u32 2, %s21
        %s205 = smul.u32 2, %s21
        %v206 = vld [vmem:[%s177] sm:$0xff]
        %v207 = vld [vmem:[%s177 + $0x8] sm:$0xff]
        %v208 = vld [vmem:[#allocation5] sm:$0xff]
        %v209 = vld [vmem:[#allocation5 + $0x8] sm:$0xff]
        %v210 = vld [vmem:[#allocation5 + $0x10] sm:$0xff]
        %v211 = vld [vmem:[#allocation5 + $0x18] sm:$0xff]
        %v212 = vld [vmem:[#allocation5 + $0x20] sm:$0xff]
        %v213 = vld [vmem:[#allocation5 + $0x28] sm:$0xff]
        %v214 = vld [vmem:[#allocation5 + $0x30] sm:$0xff]
        %v215 = vld [vmem:[#allocation5 + $0x38] sm:$0xff]
        %v216 = vld [vmem:[%s2] sm:$0x1]
        %v218 = vlaneseq
        %v219 = vshrl.u32 %v218, 7
        %v220 = vsub.s32 0, %v219
        %v221 = vrot.slane %v216, %v220
        %vm223 = vcmask 523264
        %v225 = vsel %vm223, %v206, 0
        %v228 = vsel %vm223, %v207, 0
        %230 = vmatprep.subr.mxu0 0.0
        %231 = vmatpush1.msra.mxu0 %v208
        %232 = vmatprep.subr.mxu0 0.0
        %233 = vmatpush1.msra.mxu0 %v209
        %234 = vmatprep.subr.mxu0 0.0
        %235 = vmatpush1.msra.mxu0 %v210
        %236 = vmatprep.subr.mxu0 0.0
        %237 = vmatpush1.msra.mxu0 %v211
        %238 = vmatprep.subr.mxu0 0.0
        %239 = vmatpush1.msra.mxu0 %v212
        %240 = vmatprep.subr.mxu0 0.0
        %241 = vmatpush1.msra.mxu0 %v213
        %242 = vmatprep.subr.mxu0 0.0
        %243 = vmatpush1.msra.mxu0 %v214
        %244 = vmatprep.subr.mxu0 0.0
        %245 = vmatpush1.msra.mxu0 %v215
        %246 = vmatprep.subr.mxu0 0.0
        %247 = vmatpush1.msra.mxu0 0.0
        %248 = vmatprep.subr.mxu0 0.0
        %249 = vmatpush1.msra.mxu0 0.0
        %250 = vmatprep.subr.mxu0 0.0
        %251 = vmatpush1.msra.mxu0 0.0
        %252 = vmatprep.subr.mxu0 0.0
        %253 = vmatpush1.msra.mxu0 0.0
        %254 = vmatprep.subr.mxu0 0.0
        %255 = vmatpush1.msra.mxu0 0.0
        %256 = vmatprep.subr.mxu0 0.0
        %257 = vmatpush1.msra.mxu0 0.0
        %258 = vmatprep.subr.mxu0 0.0
        %259 = vmatpush1.msra.mxu0 0.0
        %260 = vmatprep.subr.mxu0 0.0
        %261 = vmatpush1.msra.mxu0 0.0
        %262 = vmatprep.subr.mxu0 0.0
        %263 = vmatpush1.msra.mxu0 0.0
        %264 = vmatprep.subr.mxu0 0.0
        %265 = vmatpush1.msra.mxu0 0.0
        %266 = vmatprep.subr.mxu0 0.0
        %267 = vmatpush1.msra.mxu0 0.0
        %268 = vmatprep.subr.mxu0 0.0
        %269 = vmatpush1.msra.mxu0 0.0
        %270 = vmatprep.subr.mxu0 0.0
        %271 = vmatpush1.msra.mxu0 0.0
        %272 = vmatprep.subr.mxu0 0.0
        %273 = vmatpush1.msra.mxu0 0.0
        %274 = vmatprep.subr.mxu0 0.0
        %275 = vmatpush1.msra.mxu0 0.0
        %276 = vmatprep.subr.mxu0 0.0
        %277 = vmatpush1.msra.mxu0 0.0
        %278 = vmatprep.subr.mxu0 0.0
        %279 = vmatpush1.msra.mxu0 0.0
        %280 = vmatprep.subr.mxu0 0.0
        %281 = vmatpush1.msra.mxu0 0.0
        %282 = vmatprep.subr.mxu0 0.0
        %283 = vmatpush1.msra.mxu0 0.0
        %284 = vmatprep.subr.mxu0 0.0
        %285 = vmatpush1.msra.mxu0 0.0
        %286 = vmatprep.subr.mxu0 0.0
        %287 = vmatpush1.msra.mxu0 0.0
        %288 = vmatprep.subr.mxu0 0.0
        %289 = vmatpush1.msra.mxu0 0.0
        %290 = vmatprep.subr.mxu0 0.0
        %291 = vmatpush1.msra.mxu0 0.0
        %292 = vmatprep.subr.mxu0 0.0
        %293 = vmatpush1.msra.mxu0 0.0
        %294 = vmatprep.mubr.f32.mxu0 0.0
        %295 = vmatmul.mubr.f32.gmra.mrb[0].mxu0 %v225
        %v296 = vpop.f32.mrb[0].mxu0
        %v297 = vadd.f32 %v221, %v296
        %v298 = vpop.f32.mrb[0].mxu0
        %299 = vmatprep.mubr.f32.mxu0 0.0
        %300 = vmatmul.mubr.f32.gmra.mrb[0].mxu0 %v228
        %v301 = vpop.f32.mrb[0].mxu0
        %v302 = vadd.f32 %v221, %v301
        %v303 = vpop.f32.mrb[0].mxu0
        %304 = vdwg.mxu0
        %305 = vst [vmem:[%s203] sm:$0xff] %v297
        %306 = vst [vmem:[%s203 + $0x8] sm:$0xff] %v302
        %s307 = sand.u32 %s97, 1
        %s308 = scalar_lea.sflag [#allocation4], %s307
        %s309 = sand.u32 %s97, 1
        %s310 = smul.addr %s309, 16
        %s311 = scalar_lea.vmem [#allocation7], %s310
        // Predicated region
        $region41: #{tpu_custom_call.1} parent=31 // pred_check
          %p312 = pneg %p107
        $region42: #{tpu_custom_call.1} parent=31 // pred_check_branch
          %314 = sbr.rel (%p312) target = $region44
        $region43: #{tpu_custom_call.1} parent=31 // pred_region
          %s315 = smul.u32 2, %s21
          %s317 = ssub.s32 256, 256
          %318 = vsyncadd %s308, %s317
          %s319 = smul.addr %s315, 128
          %s320 = scalar_lea.hbm %s3, %s319
          %s321 = sshll.u32 %s311, 4
          %s322 = int_to_ptr.vmem [resolvable:$true] %s321
          %327 = dma.vmem_to_hbm [thread:$0]  %s322, 256, %s320, %s308, 128, 128, 8
        $region44: #{tpu_custom_call.1} parent=31 // pred_fallthru
          _
      $region32: #{tpu_custom_call.1} parent=5 // pred_fallthru
        _
      %p328 = scmp.le.s32.totalorder 2, %s16
      // Predicated region
      $region45: #{tpu_custom_call.1} parent=5 // pred_check
        %p329 = pneg %p328
      $region46: #{tpu_custom_call.1} parent=5 // pred_check_branch
        %331 = sbr.rel (%p329) target = $region48
      $region47: #{tpu_custom_call.1} parent=5 // pred_region
        %s332 = ssub.s32 %s16, 2
        // Predicated region
        $region49: #{tpu_custom_call.1} parent=47 // pred_check
          %p333 = pneg %p113
        $region50: #{tpu_custom_call.1} parent=47 // pred_check_branch
          %335 = sbr.rel (%p333) target = $region52
        $region51: #{tpu_custom_call.1} parent=47 // pred_region
          %s336 = sand.u32 %s98, 1
          %s337 = scalar_lea.sflag [#allocation4], %s336
          %s338 = sand.u32 %s98, 1
          %s339 = smul.addr %s338, 16
          %s340 = scalar_lea.vmem [#allocation7], %s339
          %341 = dma.done %s337, 256
        $region52: #{tpu_custom_call.1} parent=47 // pred_fallthru
          _
      $region48: #{tpu_custom_call.1} parent=5 // pred_fallthru
        _
    $region6: #{tpu_custom_call.1} parent=1 // loop_footer
      %s20 = sadd.s32 1, %s16
    $region7: #{tpu_custom_call.1} parent=1 // loop_footer_branch
      %15 = sbr.rel target = $region3
    $region8: #{tpu_custom_call.1} parent=1 // loop_exit
      _
    %342 = vsyncpa [#allocation3], 1
    %s343 = scalar_lea.sflag [#allocation3], 1
    %344 = vsyncpa %s343, 1
    %345 = vsyncpa [#allocation6], 1
    %346 = vsyncpa [#allocation4], 1
    %s347 = scalar_lea.sflag [#allocation4], 1
    %348 = vsyncpa %s347, 1

</llo_original>
